<compile_context>
chip_gen: v5e
topology: v5e:2x2
jax: 0.10.0
libtpu: 0.0.40
codegen_flags: <defaults>
</compile_context>

<pallas_src>
import jax
import jax.numpy as jnp
from jax.experimental import pallas as pl
from jax.experimental.pallas import tpu as pltpu


def _round_up(v, m):
    return (v + m - 1) // m * m


# ----------------------------- Pallas kernel -----------------------------

def _segating_kernel(x_ref, w1_ref, b1_ref, w2_ref, b2_ref, o_ref):
    """Fused SEGating on one (TM, D) row tile; everything stays in VMEM/vregs.

    x -> Linear(D, D8) with BatchNorm folded in -> ReLU -> Linear(D8, D)
      -> sigmoid -> x * mask
    """
    x = x_ref[...]
    # First Linear (BN already folded into W1/b1 host-side), f32 accumulate.
    h = jnp.dot(x, w1_ref[...], preferred_element_type=jnp.float32)
    h = jnp.maximum(h + b1_ref[...], 0.0)                      # bias + ReLU (f32 VPU)
    # Second Linear + sigmoid gate.
    m = jnp.dot(h, w2_ref[...], preferred_element_type=jnp.float32)
    m = jax.nn.sigmoid(m + b2_ref[...])                        # exp/recip on EUP
    o_ref[...] = (x.astype(jnp.float32) * m).astype(o_ref.dtype)


# ----------------------------- one-time param prep -----------------------------

def prepare_segating_params(params, *, eps=1e-5, weight_dtype=jnp.float32):
    """Fold eval-mode BatchNorm1d into Linear1 and pad the hidden dim.

    Call ONCE per set of weights (not per forward).  Padded hidden columns get
    zero weight/bias, so they are exactly 0 after ReLU and the zero-padded W2
    rows contribute nothing: numerics are exact.
    """
    w1 = params["w1"].astype(jnp.float32)
    b1 = params["b1"].astype(jnp.float32)
    w2 = params["w2"].astype(jnp.float32)
    b2 = params["b2"].astype(jnp.float32)

    inv = jax.lax.rsqrt(params["bn_rv"].astype(jnp.float32) + eps)
    scale = params["bn_g"].astype(jnp.float32) * inv
    shift = params["bn_b"].astype(jnp.float32) - params["bn_rm"].astype(jnp.float32) * scale

    # (x@W1 + b1)*scale + shift  ==  x@(W1*scale) + (b1*scale + shift)
    w1f = w1 * scale[None, :]
    b1f = b1 * scale + shift

    D, D8 = w1.shape
    D8p = _round_up(D8, 128)
    pad = D8p - D8
    w1f = jnp.pad(w1f, ((0, 0), (0, pad)))
    b1f = jnp.pad(b1f, ((0, pad),)).reshape(1, D8p)
    w2p = jnp.pad(w2, ((0, pad), (0, 0)))
    b2r = b2.reshape(1, D)

    return {
        "w1": w1f.astype(weight_dtype),
        "b1": b1f.astype(weight_dtype),
        "w2": w2p.astype(weight_dtype),
        "b2": b2r.astype(weight_dtype),
    }


# ----------------------------- wrapper -----------------------------

def se_gating(prepared, emb, *, row_tile=512):
    """SEGating forward.  emb: (..., D) array.  Returns same shape & dtype."""
    orig_shape = emb.shape
    D = orig_shape[-1]
    x = emb.reshape(-1, D)
    M = x.shape[0]

    w1, b1, w2, b2 = prepared["w1"], prepared["b1"], prepared["w2"], prepared["b2"]
    D8p = w1.shape[1]
    itemsize = jnp.dtype(emb.dtype).itemsize

    # --- row-tile selection ---------------------------------------------------
    TM = max(8, _round_up(int(row_tile), 8))            # enforce sublane multiple
    # Keep double-buffered x + out tiles within a v7x-safe activation budget.
    act_budget = 24 * 1024 * 1024
    while TM > 8 and 4 * TM * D * itemsize > act_budget:
        TM = max(8, _round_up(TM // 2, 8))
    # Give the "parallel" row axis >= 2 steps for moderate batches (v7x 2 TCs).
    if M > 16 and M <= TM:
        TM = max(8, _round_up((M + 1) // 2, 8))
    # Single-step case: block == full row extent (always a legal block shape).
    if M <= TM:
        TM = M
    grid = (pl.cdiv(M, TM),)

    weight_bytes = sum(int(a.size) * jnp.dtype(a.dtype).itemsize
                       for a in (w1, b1, w2, b2))
    # Double-buffered x/out tiles + weights + hidden scratch + slack.
    need = 4 * TM * D * itemsize + 2 * weight_bytes + 4 * TM * D8p * 4 + (4 << 20)
    vmem_limit = int(min(max(need, 32 << 20), 48 << 20))

    cost = pl.CostEstimate(
        flops=4 * M * D * D8p,                 # two matmuls
        transcendentals=M * D,                 # sigmoid
        bytes_accessed=2 * M * D * itemsize + weight_bytes,
    )

    out = pl.pallas_call(
        _segating_kernel,
        out_shape=jax.ShapeDtypeStruct((M, D), emb.dtype),
        grid=grid,
        in_specs=[
            pl.BlockSpec((TM, D), lambda i: (i, 0)),     # x row tile
            pl.BlockSpec((D, D8p), lambda i: (0, 0)),    # folded W1 (resident)
            pl.BlockSpec((1, D8p), lambda i: (0, 0)),    # folded b1
            pl.BlockSpec((D8p, D), lambda i: (0, 0)),    # W2 (resident)
            pl.BlockSpec((1, D), lambda i: (0, 0)),      # b2
        ],
        out_specs=pl.BlockSpec((TM, D), lambda i: (i, 0)),
        compiler_params=pltpu.CompilerParams(
            dimension_semantics=("parallel",),
            vmem_limit_bytes=vmem_limit),
        cost_estimate=cost,
    )(x, w1, b1, w2, b2)

    return out.reshape(orig_shape)


# ----------------------------- reference & init -----------------------------

def se_gating_ref(params, emb, eps=1e-5):
    """Pure-JAX reference (PyTorch eval-mode semantics, unfolded BN)."""
    x = emb.astype(jnp.float32)
    h = x @ params["w1"] + params["b1"]
    h = (h - params["bn_rm"]) * jax.lax.rsqrt(params["bn_rv"] + eps)
    h = h * params["bn_g"] + params["bn_b"]
    h = jnp.maximum(h, 0.0)
    m = jax.nn.sigmoid(h @ params["w2"] + params["b2"])
    return x * m


def init_segating_params(key, input_dim):
    d8 = input_dim // 8
    ks = jax.random.split(key, 8)
    return {
        "w1": 0.05 * jax.random.normal(ks[0], (input_dim, d8), jnp.float32),
        "b1": 0.05 * jax.random.normal(ks[1], (d8,), jnp.float32),
        "bn_g": 1.0 + 0.1 * jax.random.normal(ks[2], (d8,), jnp.float32),
        "bn_b": 0.1 * jax.random.normal(ks[3], (d8,), jnp.float32),
        "bn_rm": 0.1 * jax.random.normal(ks[4], (d8,), jnp.float32),
        "bn_rv": 0.5 + jnp.abs(jax.random.normal(ks[5], (d8,), jnp.float32)),
        "w2": 0.05 * jax.random.normal(ks[6], (d8, input_dim), jnp.float32),
        "b2": 0.05 * jax.random.normal(ks[7], (input_dim,), jnp.float32),
    }


# ----------------------------- main -----------------------------

if __name__ == "__main__":
    key = jax.random.PRNGKey(0)

    # Case 1: shapes implied by TVA_fusion usage (SEGating(3*H) with H=32, batch=2).
    B, D = 2, 96
    kp, kx, k2p, k2x = jax.random.split(key, 4)
    params = init_segating_params(kp, D)
    prep = prepare_segating_params(params)          # one-time fold + pad
    emb = jax.random.normal(kx, (B, D), jnp.float32)

    out = jax.block_until_ready(se_gating(prep, emb))
    ref = se_gating_ref(params, emb)
    assert out.shape == emb.shape and out.dtype == emb.dtype
    assert bool(jnp.all(jnp.isfinite(out)))
    assert bool(jnp.allclose(out, ref, atol=1e-5, rtol=1e-5))

    # Case 2: larger batch exercises the multi-step "parallel" row grid.
    B2, D2 = 512, 384
    params2 = init_segating_params(k2p, D2)
    prep2 = prepare_segating_params(params2)
    emb2 = jax.random.normal(k2x, (B2, D2), jnp.float32)
    out2 = jax.block_until_ready(se_gating(prep2, emb2))
    ref2 = se_gating_ref(params2, emb2)
    assert out2.shape == emb2.shape and out2.dtype == emb2.dtype
    assert bool(jnp.allclose(out2, ref2, atol=1e-4, rtol=1e-4))

    # Case 3: bf16 activations keep bf16 HBM traffic and a bf16 output.
    emb_bf = emb2.astype(jnp.bfloat16)
    out_bf = jax.block_until_ready(se_gating(prep2, emb_bf))
    assert out_bf.dtype == jnp.bfloat16 and out_bf.shape == emb_bf.shape
    ref_bf = se_gating_ref(params2, emb_bf.astype(jnp.float32))
    assert bool(jnp.allclose(out_bf.astype(jnp.float32), ref_bf, atol=3e-2, rtol=3e-2))

    print("KERNEL_OK")
</pallas_src>

<mosaic_0001>
module attributes {stable_mosaic.version = 11 : i64} {
  func.func @_segating_kernel(%arg0: i32, %arg1: memref<2x96xf32, #tpu.memory_space<vmem>>, %arg2: memref<96x128xf32, #tpu.memory_space<vmem>>, %arg3: memref<1x128xf32, #tpu.memory_space<vmem>>, %arg4: memref<128x96xf32, #tpu.memory_space<vmem>>, %arg5: memref<1x96xf32, #tpu.memory_space<vmem>>, %arg6: memref<2x96xf32, #tpu.memory_space<vmem>>) attributes {dimension_semantics = [#tpu.dimension_semantics<parallel>], iteration_bounds = array<i64: 1>, scalar_prefetch = 0 : i64, scratch_operands = 0 : i64, tpu.core_type = #tpu.core_type<tc>, window_params = [{transform_indices = @transform_0, window_bounds = array<i64: 2, 96>}, {pipeline_mode = #tpu.pipeline_mode<synchronous>, transform_indices = @transform_1, window_bounds = array<i64: 96, 128>}, {pipeline_mode = #tpu.pipeline_mode<synchronous>, transform_indices = @transform_2, window_bounds = array<i64: 1, 128>}, {pipeline_mode = #tpu.pipeline_mode<synchronous>, transform_indices = @transform_3, window_bounds = array<i64: 128, 96>}, {pipeline_mode = #tpu.pipeline_mode<synchronous>, transform_indices = @transform_4, window_bounds = array<i64: 1, 96>}, {transform_indices = @transform_5, window_bounds = array<i64: 2, 96>}]} {
    %c0 = arith.constant 0 : index
    %c0_0 = arith.constant 0 : index
    %0 = vector.load %arg1[%c0, %c0_0] : memref<2x96xf32, #tpu.memory_space<vmem>>, vector<2x96xf32>
    %c0_1 = arith.constant 0 : index
    %c0_2 = arith.constant 0 : index
    %1 = vector.load %arg2[%c0_1, %c0_2] : memref<96x128xf32, #tpu.memory_space<vmem>>, vector<96x128xf32>
    %cst = arith.constant dense<0.000000e+00> : vector<2x128xf32>
    %2 = tpu.matmul %0, %1, %cst {dimension_numbers = #tpu.dot_dimension_numbers<[1], [0], [0], [1], [0, 0, 1, 1], [], []>} : vector<2x96xf32>, vector<96x128xf32>, vector<2x128xf32> -> vector<2x128xf32>
    %c0_3 = arith.constant 0 : index
    %c0_4 = arith.constant 0 : index
    %3 = vector.load %arg3[%c0_3, %c0_4] : memref<1x128xf32, #tpu.memory_space<vmem>>, vector<1x128xf32>
    %4 = vector.broadcast %3 : vector<1x128xf32> to vector<2x128xf32>
    %5 = arith.addf %2, %4 : vector<2x128xf32>
    %cst_5 = arith.constant 0.000000e+00 : f32
    %6 = vector.broadcast %cst_5 : f32 to vector<2x128xf32>
    %7 = arith.maximumf %5, %6 : vector<2x128xf32>
    %c0_6 = arith.constant 0 : index
    %c0_7 = arith.constant 0 : index
    %8 = vector.load %arg4[%c0_6, %c0_7] : memref<128x96xf32, #tpu.memory_space<vmem>>, vector<128x96xf32>
    %cst_8 = arith.constant dense<0.000000e+00> : vector<2x96xf32>
    %9 = tpu.matmul %7, %8, %cst_8 {dimension_numbers = #tpu.dot_dimension_numbers<[1], [0], [0], [1], [0, 0, 1, 1], [], []>} : vector<2x128xf32>, vector<128x96xf32>, vector<2x96xf32> -> vector<2x96xf32>
    %c0_9 = arith.constant 0 : index
    %c0_10 = arith.constant 0 : index
    %10 = vector.load %arg5[%c0_9, %c0_10] : memref<1x96xf32, #tpu.memory_space<vmem>>, vector<1x96xf32>
    %11 = vector.broadcast %10 : vector<1x96xf32> to vector<2x96xf32>
    %12 = arith.addf %9, %11 : vector<2x96xf32>
    %13 = arith.negf %12 : vector<2x96xf32>
    %14 = math.exp %13 : vector<2x96xf32>
    %cst_11 = arith.constant 1.000000e+00 : f32
    %15 = vector.broadcast %cst_11 : f32 to vector<2x96xf32>
    %16 = arith.addf %15, %14 : vector<2x96xf32>
    %17 = arith.divf %15, %16 : vector<2x96xf32>
    %18 = arith.mulf %0, %17 : vector<2x96xf32>
    %c0_12 = arith.constant 0 : index
    %c0_13 = arith.constant 0 : index
    %19 = vector.load %arg6[%c0_12, %c0_13] : memref<2x96xf32, #tpu.memory_space<vmem>>, vector<2x96xf32>
    tpu.vector_store %arg6[%c0_12, %c0_13], %18 {strides = array<i32>} : memref<2x96xf32, #tpu.memory_space<vmem>>, vector<2x96xf32>,
    return
  }
  func.func @transform_0(%arg0: i32) -> (i32, i32) {
    %c0_i32 = arith.constant 0 : i32
    %c0_i32_0 = arith.constant 0 : i32
    return %arg0, %c0_i32 : i32, i32
  }
  func.func @transform_1(%arg0: i32) -> (i32, i32) {
    %c0_i32 = arith.constant 0 : i32
    %c0_i32_0 = arith.constant 0 : i32
    %c0_i32_1 = arith.constant 0 : i32
    return %c0_i32, %c0_i32_0 : i32, i32
  }
  func.func @transform_2(%arg0: i32) -> (i32, i32) {
    %c0_i32 = arith.constant 0 : i32
    %c0_i32_0 = arith.constant 0 : i32
    %c0_i32_1 = arith.constant 0 : i32
    return %c0_i32, %c0_i32_0 : i32, i32
  }
  func.func @transform_3(%arg0: i32) -> (i32, i32) {
    %c0_i32 = arith.constant 0 : i32
    %c0_i32_0 = arith.constant 0 : i32
    %c0_i32_1 = arith.constant 0 : i32
    return %c0_i32, %c0_i32_0 : i32, i32
  }
  func.func @transform_4(%arg0: i32) -> (i32, i32) {
    %c0_i32 = arith.constant 0 : i32
    %c0_i32_0 = arith.constant 0 : i32
    %c0_i32_1 = arith.constant 0 : i32
    return %c0_i32, %c0_i32_0 : i32, i32
  }
  func.func @transform_5(%arg0: i32) -> (i32, i32) {
    %c0_i32 = arith.constant 0 : i32
    %c0_i32_0 = arith.constant 0 : i32
    return %arg0, %c0_i32 : i32, i32
  }
}

</mosaic_0001>

<llo_original>
// kernel: tpu_custom_call.1
$region0: #{tpu_custom_call.1}
  #allocation0 [shape = 'u32[]', space=smem, size = 0x4, offset = 0x4, fixed_abs, tag = 'smem constant byte address 0x4 - core index']
  #allocation1 [shape = 'u32[72,128]{1,0:T(1,128)}', space=vmem, size = 0x9000, scoped, tag = 'internal scratch']
  %s0 = inlined_call_operand.vmem [shape: f32[2,96], index: 0, kind: input, shape index: {}]
  %s1 = inlined_call_operand.vmem [shape: f32[96,128], index: 1, kind: input, shape index: {}]
  %s2 = inlined_call_operand.vmem [shape: f32[1,128], index: 2, kind: input, shape index: {}]
  %s3 = inlined_call_operand.vmem [shape: f32[128,96], index: 3, kind: input, shape index: {}]
  %s4 = inlined_call_operand.vmem [shape: f32[1,96], index: 4, kind: input, shape index: {}]
  %s5 = inlined_call_operand.hbm [shape: f32[2,96], index: 5, kind: output, shape index: {}]
  %s6 = sld [smem:[#allocation0]]
  $region30: #{tpu_custom_call.1} parent=0
    _
  %s8 = ssub.s32 1, %s6
  %s9 = scalar_select 0, %s8, %s6
  $region1: #{tpu_custom_call.1} parent=0
    #allocation2 [shape = 'u8[1024]{0}', space=vmem, size = 0x400, scoped, tag = 'output window, operand 0, single buffered']
    #allocation3 [shape = 's32[1]{0}', space=sflag, size = 0x4, scoped, tag = 'scoped memory for tpu_custom_call.1']
    %10 = vsyncpa [#allocation3], 0
    // Predicated region
    $region2: #{tpu_custom_call.1} parent=1 // pred_check
      _
    $region3: #{tpu_custom_call.1} parent=1 // pred_check_branch
      %12 = sbr.rel (0) target = $region5
    $region4: #{tpu_custom_call.1} parent=1 // pred_region
      _
    $region5: #{tpu_custom_call.1} parent=1 // pred_fallthru
      _
    // Predicated region
    $region6: #{tpu_custom_call.1} parent=1 // pred_check
      _
    $region7: #{tpu_custom_call.1} parent=1 // pred_check_branch
      %14 = sbr.rel (0) target = $region9
    $region8: #{tpu_custom_call.1} parent=1 // pred_region
      _
    $region9: #{tpu_custom_call.1} parent=1 // pred_fallthru
      _
    // Predicated region
    $region10: #{tpu_custom_call.1} parent=1 // pred_check
      _
    $region11: #{tpu_custom_call.1} parent=1 // pred_check_branch
      %16 = sbr.rel (0) target = $region13
    $region12: #{tpu_custom_call.1} parent=1 // pred_region
      _
    $region13: #{tpu_custom_call.1} parent=1 // pred_fallthru
      _
    // Predicated region
    $region14: #{tpu_custom_call.1} parent=1 // pred_check
      _
    $region15: #{tpu_custom_call.1} parent=1 // pred_check_branch
      %18 = sbr.rel (0) target = $region17
    $region16: #{tpu_custom_call.1} parent=1 // pred_region
      _
    $region17: #{tpu_custom_call.1} parent=1 // pred_fallthru
      _
    // Predicated region
    $region18: #{tpu_custom_call.1} parent=1 // pred_check
      _
    $region19: #{tpu_custom_call.1} parent=1 // pred_check_branch
      %20 = sbr.rel (0) target = $region21
    $region20: #{tpu_custom_call.1} parent=1 // pred_region
      _
    $region21: #{tpu_custom_call.1} parent=1 // pred_fallthru
      _
    %v21 = vld [vmem:[%s0] sm:$0x3]
    %v22 = vld [vmem:[%s1] sm:$0xff]
    %v23 = vld [vmem:[%s1 + $0x8] sm:$0xff]
    %v24 = vld [vmem:[%s1 + $0x10] sm:$0xff]
    %v25 = vld [vmem:[%s1 + $0x18] sm:$0xff]
    %v26 = vld [vmem:[%s1 + $0x20] sm:$0xff]
    %v27 = vld [vmem:[%s1 + $0x28] sm:$0xff]
    %v28 = vld [vmem:[%s1 + $0x30] sm:$0xff]
    %v29 = vld [vmem:[%s1 + $0x38] sm:$0xff]
    %v30 = vld [vmem:[%s1 + $0x40] sm:$0xff]
    %v31 = vld [vmem:[%s1 + $0x48] sm:$0xff]
    %v32 = vld [vmem:[%s1 + $0x50] sm:$0xff]
    %v33 = vld [vmem:[%s1 + $0x58] sm:$0xff]
    %v34 = vld [vmem:[%s2] sm:$0x1]
    %v36 = vperm.slane %v34, 0
    %vm38 = vcmask 785408
    %v40 = vsel %vm38, %v21, 0
    %42 = vmatpush.msra.mxu0 0.0
    %43 = vmatpush.msra.mxu0 0.0
    %44 = vmatpush.msra.mxu0 0.0
    %45 = vmatpush.msra.mxu0 0.0
    %46 = vmatpush.msra.mxu0 %v33
    %47 = vmatpush.msra.mxu0 %v32
    %48 = vmatpush.msra.mxu0 %v31
    %49 = vmatpush.msra.mxu0 %v30
    %50 = vmatpush.msra.mxu0 %v29
    %51 = vmatpush.msra.mxu0 %v28
    %52 = vmatpush.msra.mxu0 %v27
    %53 = vmatpush.msra.mxu0 %v26
    %54 = vmatpush.msra.mxu0 %v25
    %55 = vmatpush.msra.mxu0 %v24
    %56 = vmatpush.msra.mxu0 %v23
    %57 = vmatpush.msra.mxu0 %v22
    %58 = vmatmul.f32.gmra.mxu0 %v40
    %v59 = vpop.f32.mrf.mxu0
    %v60 = vadd.f32 %v36, %v59
    %61 = vdwg.mxu0
    %v62 = vmax.f32 %v60, 0.0
    %v63 = vld [vmem:[%s3] sm:$0xff]
    %v64 = vld [vmem:[%s3 + $0x8] sm:$0xff]
    %v65 = vld [vmem:[%s3 + $0x10] sm:$0xff]
    %v66 = vld [vmem:[%s3 + $0x18] sm:$0xff]
    %v67 = vld [vmem:[%s3 + $0x20] sm:$0xff]
    %v68 = vld [vmem:[%s3 + $0x28] sm:$0xff]
    %v69 = vld [vmem:[%s3 + $0x30] sm:$0xff]
    %v70 = vld [vmem:[%s3 + $0x38] sm:$0xff]
    %v71 = vld [vmem:[%s3 + $0x40] sm:$0xff]
    %v72 = vld [vmem:[%s3 + $0x48] sm:$0xff]
    %v73 = vld [vmem:[%s3 + $0x50] sm:$0xff]
    %v74 = vld [vmem:[%s3 + $0x58] sm:$0xff]
    %v75 = vld [vmem:[%s3 + $0x60] sm:$0xff]
    %v76 = vld [vmem:[%s3 + $0x68] sm:$0xff]
    %v77 = vld [vmem:[%s3 + $0x70] sm:$0xff]
    %v78 = vld [vmem:[%s3 + $0x78] sm:$0xff]
    %v79 = vld [vmem:[%s4] sm:$0x1]
    %v81 = vperm.slane %v79, 0
    %83 = vmatpush.msra.mxu0 %v78
    %84 = vmatpush.msra.mxu0 %v77
    %85 = vmatpush.msra.mxu0 %v76
    %86 = vmatpush.msra.mxu0 %v75
    %87 = vmatpush.msra.mxu0 %v74
    %88 = vmatpush.msra.mxu0 %v73
    %89 = vmatpush.msra.mxu0 %v72
    %90 = vmatpush.msra.mxu0 %v71
    %91 = vmatpush.msra.mxu0 %v70
    %92 = vmatpush.msra.mxu0 %v69
    %93 = vmatpush.msra.mxu0 %v68
    %94 = vmatpush.msra.mxu0 %v67
    %95 = vmatpush.msra.mxu0 %v66
    %96 = vmatpush.msra.mxu0 %v65
    %97 = vmatpush.msra.mxu0 %v64
    %98 = vmatpush.msra.mxu0 %v63
    %99 = vmatmul.f32.gmra.mxu0 %v62
    %v100 = vpop.f32.mrf.mxu0
    %v101 = vadd.f32 %v81, %v100
    %102 = vdwg.mxu0
    %v103 = vxor.u32 %v101, 2147483648
    %v104 = vmul.f32 %v103, 1.442695
    %v105 = vpow.pop %v104
    %v106 = vadd.f32 %v105, 1.0
    %v107 = vrcp.pop %v106
    %v108 = vmul.f32 %v106, %v107
    %v109 = vsub.f32 1.0, %v108
    %v110 = vmul.f32 %v107, %v109
    %v111 = vadd.f32 %v107, %v110
    %vm112 = vweird.f32 %v106
    %vm113 = vweird.f32 %v107
    %vm114 = vmor %vm112, %vm113
    %v115 = vsel %vm114, %v107, %v111
    %v116 = vand.u32 2147483647, %v106
    %vm117 = vcmp.eq.f32.partialorder %v116, 8.507059e+37
    %v118 = vand.u32 %v106, 2147483648
    %v119 = vor.u32 1.1754944e-38, %v118
    %v120 = vsel %vm117, %v119, %v115
    %v121 = vmul.f32 1.0, %v120
    %v122 = vmul.f32 %v21, %v121
    %vm123 = vcmask 779264
    %124 = vst.msk [vmem:[#allocation2] sm:$0x3] %vm123, %v122
    // Predicated region
    $region22: #{tpu_custom_call.1} parent=1 // pred_check
      _
    $region23: #{tpu_custom_call.1} parent=1 // pred_check_branch
      %126 = sbr.rel (0) target = $region25
    $region24: #{tpu_custom_call.1} parent=1 // pred_region
      %128 = vsyncadd [#allocation3], 0
      %s130 = sshll.u32 [#allocation2], 4
      %s131 = int_to_ptr.vmem [resolvable:$true] %s130
      %s132 = sshll.u32 %s5, 4
      %s133 = int_to_ptr.hbm [resolvable:$true] %s132
      %135 = dma.vmem_to_hbm [thread:$0]  %s131, 32, %s133, [#allocation3]
    $region25: #{tpu_custom_call.1} parent=1 // pred_fallthru
      _
    // Predicated region
    $region26: #{tpu_custom_call.1} parent=1 // pred_check
      _
    $region27: #{tpu_custom_call.1} parent=1 // pred_check_branch
      %137 = sbr.rel (0) target = $region29
    $region28: #{tpu_custom_call.1} parent=1 // pred_region
      %139 = dma.done [#allocation3], 32
    $region29: #{tpu_custom_call.1} parent=1 // pred_fallthru
      _
    %140 = vsyncpa [#allocation3], 1

</llo_original>
